<compile_context>
chip_gen: v6e
topology: v6e:2x2x1
jax: 0.10.0
libtpu: 0.0.40
codegen_flags: <defaults>
</compile_context>

<pallas_src>
import jax
import jax.numpy as jnp
from jax.experimental import pallas as pl
from jax.experimental.pallas import tpu as pltpu


def dueling_head_kernel(
    x_ref,             # (TM, S)        f32    state tile (cast to bf16 in-kernel)
    w1_ref, b1_ref,    # (S, H1) bf16 / (1, H1) f32        feature Linear
    wh_ref, bh_ref,    # (H1, 2*H2) bf16 / (1, 2*H2) f32   fused [adv|val] hidden Linear
    wo_ref, bo_ref,    # (2*H2, P) bf16 / (1, P) f32       block-diag packed [adv|val] output Linear
    head_ref,          # (TM, P) bf16   lanes [0:A)=advantage, lane A=value, lanes>A zero
):
    # feature = ReLU(x @ W1 + b1)   (bf16 inputs, f32 accumulation on the MXU)
    x = x_ref[...].astype(jnp.bfloat16)
    h = jnp.dot(x, w1_ref[...], preferred_element_type=jnp.float32) + b1_ref[...]
    h = jnp.maximum(h, 0.0).astype(jnp.bfloat16)                        # (TM, H1)

    # fused hidden layer of both heads: columns [0:H2)=adv hidden, [H2:2H2)=val hidden
    h2 = jnp.dot(h, wh_ref[...], preferred_element_type=jnp.float32) + bh_ref[...]
    h2 = jnp.maximum(h2, 0.0).astype(jnp.bfloat16)                      # (TM, 2*H2)

    # single block-diagonal output matmul -> lane-dense head slab
    head = jnp.dot(h2, wo_ref[...], preferred_element_type=jnp.float32) + bo_ref[...]  # (TM, P) f32
    head_ref[...] = head.astype(head_ref.dtype)


def dueling_qnet_forward(x, packed, *, block_b=512):
    """x: (B, state_size) f32.  packed: dict produced by pack_params()."""
    B, S = x.shape
    A = packed["action_size"]
    P = packed["wo"].shape[1]

    # Pad the batch to a multiple of block_b with zero rows (fixed-size, pipelined tiles).
    n_tiles = pl.cdiv(B, block_b)
    Bp = n_tiles * block_b
    if Bp != B:
        x = jnp.pad(x, ((0, Bp - B), (0, 0)))

    def weight_spec(arr):
        # full-array block, same block every grid step -> DMA'd once, VMEM-resident
        return pl.BlockSpec(arr.shape, lambda i: (0, 0))

    grid_spec = pltpu.PrefetchScalarGridSpec(
        num_scalar_prefetch=0,
        grid=(n_tiles,),
        in_specs=[
            pl.BlockSpec((block_b, S), lambda i: (i, 0)),   # x: batch-tiled, pipelined
            weight_spec(packed["w1"]), weight_spec(packed["b1"]),
            weight_spec(packed["wh"]), weight_spec(packed["bh"]),
            weight_spec(packed["wo"]), weight_spec(packed["bo"]),
        ],
        out_specs=pl.BlockSpec((block_b, P), lambda i: (i, 0)),  # lane-dense head slab
    )

    head = pl.pallas_call(
        dueling_head_kernel,
        grid_spec=grid_spec,
        out_shape=jax.ShapeDtypeStruct((Bp, P), jnp.bfloat16),
        # batch tiles are independent -> "parallel" (2-TC sharding on v7x)
        compiler_params=pltpu.CompilerParams(dimension_semantics=("parallel",)),
    )(x, packed["w1"], packed["b1"], packed["wh"], packed["bh"],
      packed["wo"], packed["bo"])

    # Epilogue (f32): slice the real rows, global advantage mean, dueling combine.
    # Invariant: only lanes [0:A] of `head` are meaningful (wo/bo padding is zero).
    head = head[:B].astype(jnp.float32)
    adv = head[:, :A]                       # (B, A)
    val = head[:, A:A + 1]                  # (B, 1)
    return val + adv - jnp.mean(adv)


# ----------------------------- parameter handling -----------------------------

def init_params(key, state_size, action_size, fc1_units, fc2_units):
    """nn.Linear-style U(-1/sqrt(fan_in), 1/sqrt(fan_in)) init; weights stored (in, out)."""
    def linear(key, fan_in, fan_out):
        kw, kb = jax.random.split(key)
        bound = 1.0 / jnp.sqrt(fan_in)
        w = jax.random.uniform(kw, (fan_in, fan_out), jnp.float32, -bound, bound)
        b = jax.random.uniform(kb, (1, fan_out), jnp.float32, -bound, bound)
        return w, b

    keys = jax.random.split(key, 5)
    w1, b1 = linear(keys[0], state_size, fc1_units)
    wa1, ba1 = linear(keys[1], fc1_units, fc2_units)
    wa2, ba2 = linear(keys[2], fc2_units, action_size)
    wv1, bv1 = linear(keys[3], fc1_units, fc2_units)
    wv2, bv2 = linear(keys[4], fc2_units, 1)
    return {"w1": w1, "b1": b1, "wa1": wa1, "ba1": ba1, "wa2": wa2, "ba2": ba2,
            "wv1": wv1, "bv1": bv1, "wv2": wv2, "bv2": bv2}


def pack_params(raw, action_size):
    """Fuse/pack raw per-layer params into the kernel layout (bf16 weights, f32 biases)."""
    H2 = raw["wa1"].shape[1]
    A = action_size
    P = max(128, pl.cdiv(A + 1, 128) * 128)       # lane-padded output width

    wh = jnp.concatenate([raw["wa1"], raw["wv1"]], axis=1)        # (H1, 2*H2)
    bh = jnp.concatenate([raw["ba1"], raw["bv1"]], axis=1)        # (1, 2*H2)

    wo = jnp.zeros((2 * H2, P), jnp.float32)                      # block-diagonal packing
    wo = wo.at[:H2, :A].set(raw["wa2"])                           # advantage block
    wo = wo.at[H2:, A].set(raw["wv2"][:, 0])                      # value column
    bo = jnp.zeros((1, P), jnp.float32)
    bo = bo.at[0, :A].set(raw["ba2"][0])
    bo = bo.at[0, A].set(raw["bv2"][0, 0])

    return {
        "w1": raw["w1"].astype(jnp.bfloat16), "b1": raw["b1"],
        "wh": wh.astype(jnp.bfloat16),        "bh": bh,
        "wo": wo.astype(jnp.bfloat16),        "bo": bo,
        "action_size": A,
    }


# --------------------------------- references ---------------------------------

def reference_forward_bf16(x, packed, action_size):
    """Plain-JAX mirror of the kernel numerics (bf16 matmuls, f32 accumulate, bf16 head)."""
    xb = x.astype(jnp.bfloat16)
    h = jnp.maximum(jnp.dot(xb, packed["w1"], preferred_element_type=jnp.float32)
                    + packed["b1"], 0.0).astype(jnp.bfloat16)
    h2 = jnp.maximum(jnp.dot(h, packed["wh"], preferred_element_type=jnp.float32)
                     + packed["bh"], 0.0).astype(jnp.bfloat16)
    head = (jnp.dot(h2, packed["wo"], preferred_element_type=jnp.float32)
            + packed["bo"]).astype(jnp.bfloat16).astype(jnp.float32)
    adv = head[:, :action_size]
    val = head[:, action_size:action_size + 1]
    return val + adv - jnp.mean(adv)


def reference_forward_f32(x, p):
    """Full-f32 reference with the original PyTorch forward semantics."""
    h = jax.nn.relu(x @ p["w1"] + p["b1"])
    adv = jax.nn.relu(h @ p["wa1"] + p["ba1"]) @ p["wa2"] + p["ba2"]
    val = jax.nn.relu(h @ p["wv1"] + p["bv1"]) @ p["wv2"] + p["bv2"]
    return val + adv - jnp.mean(adv)


if __name__ == "__main__":
    # Small shapes consistent with the module; batch is NOT a multiple of the tile so the
    # padding path is exercised, and there are 2 grid steps (384 -> padded 512, block 256).
    batch, state_size, action_size = 384, 16, 4
    fc1_units, fc2_units = 128, 128

    key = jax.random.PRNGKey(0)
    kx, kp = jax.random.split(key)
    x = jax.random.normal(kx, (batch, state_size), jnp.float32)

    raw = init_params(kp, state_size, action_size, fc1_units, fc2_units)
    packed = pack_params(raw, action_size)

    out = dueling_qnet_forward(x, packed, block_b=256)
    out = jax.block_until_ready(out)
    assert out.shape == (batch, action_size)

    # Tight check vs. a plain-JAX mirror of the kernel's bf16/f32 numerics.
    ref_bf16 = reference_forward_bf16(x, packed, action_size)
    assert jnp.allclose(out, ref_bf16, atol=1e-2, rtol=1e-2), "mismatch vs bf16 reference"

    # Loose structural check vs. the original full-f32 PyTorch semantics.
    ref_f32 = reference_forward_f32(x, raw)
    assert jnp.allclose(out, ref_f32, atol=6e-2, rtol=6e-2), "mismatch vs f32 reference"

    print("KERNEL_OK")
</pallas_src>

<mosaic_0001>
module attributes {stable_mosaic.version = 11 : i64} {
  func.func @dueling_head_kernel(%arg0: i32, %arg1: memref<256x16xf32, #tpu.memory_space<vmem>>, %arg2: memref<16x128xbf16, #tpu.memory_space<vmem>>, %arg3: memref<1x128xf32, #tpu.memory_space<vmem>>, %arg4: memref<128x256xbf16, #tpu.memory_space<vmem>>, %arg5: memref<1x256xf32, #tpu.memory_space<vmem>>, %arg6: memref<256x128xbf16, #tpu.memory_space<vmem>>, %arg7: memref<1x128xf32, #tpu.memory_space<vmem>>, %arg8: memref<256x128xbf16, #tpu.memory_space<vmem>>) attributes {dimension_semantics = [#tpu.dimension_semantics<parallel>], iteration_bounds = array<i64: 2>, scalar_prefetch = 0 : i64, scratch_operands = 0 : i64, tpu.core_type = #tpu.core_type<tc>, window_params = [{transform_indices = @transform_0, window_bounds = array<i64: 256, 16>}, {pipeline_mode = #tpu.pipeline_mode<synchronous>, transform_indices = @transform_1, window_bounds = array<i64: 16, 128>}, {pipeline_mode = #tpu.pipeline_mode<synchronous>, transform_indices = @transform_2, window_bounds = array<i64: 1, 128>}, {pipeline_mode = #tpu.pipeline_mode<synchronous>, transform_indices = @transform_3, window_bounds = array<i64: 128, 256>}, {pipeline_mode = #tpu.pipeline_mode<synchronous>, transform_indices = @transform_4, window_bounds = array<i64: 1, 256>}, {pipeline_mode = #tpu.pipeline_mode<synchronous>, transform_indices = @transform_5, window_bounds = array<i64: 256, 128>}, {pipeline_mode = #tpu.pipeline_mode<synchronous>, transform_indices = @transform_6, window_bounds = array<i64: 1, 128>}, {transform_indices = @transform_7, window_bounds = array<i64: 256, 128>}]} {
    %c0 = arith.constant 0 : index
    %c0_0 = arith.constant 0 : index
    %0 = vector.load %arg1[%c0, %c0_0] : memref<256x16xf32, #tpu.memory_space<vmem>>, vector<256x16xf32>
    %1 = arith.truncf %0 : vector<256x16xf32> to vector<256x16xbf16>
    %c0_1 = arith.constant 0 : index
    %c0_2 = arith.constant 0 : index
    %2 = vector.load %arg2[%c0_1, %c0_2] : memref<16x128xbf16, #tpu.memory_space<vmem>>, vector<16x128xbf16>
    %cst = arith.constant dense<0.000000e+00> : vector<256x128xf32>
    %3 = tpu.matmul %1, %2, %cst {dimension_numbers = #tpu.dot_dimension_numbers<[1], [0], [0], [1], [0, 0, 1, 1], [], []>} : vector<256x16xbf16>, vector<16x128xbf16>, vector<256x128xf32> -> vector<256x128xf32>
    %c0_3 = arith.constant 0 : index
    %c0_4 = arith.constant 0 : index
    %4 = vector.load %arg3[%c0_3, %c0_4] : memref<1x128xf32, #tpu.memory_space<vmem>>, vector<1x128xf32>
    %5 = vector.broadcast %4 : vector<1x128xf32> to vector<256x128xf32>
    %6 = arith.addf %3, %5 : vector<256x128xf32>
    %cst_5 = arith.constant 0.000000e+00 : f32
    %7 = vector.broadcast %cst_5 : f32 to vector<256x128xf32>
    %8 = arith.maximumf %6, %7 : vector<256x128xf32>
    %9 = arith.truncf %8 : vector<256x128xf32> to vector<256x128xbf16>
    %c0_6 = arith.constant 0 : index
    %c0_7 = arith.constant 0 : index
    %10 = vector.load %arg4[%c0_6, %c0_7] : memref<128x256xbf16, #tpu.memory_space<vmem>>, vector<128x256xbf16>
    %cst_8 = arith.constant dense<0.000000e+00> : vector<256x256xf32>
    %11 = tpu.matmul %9, %10, %cst_8 {dimension_numbers = #tpu.dot_dimension_numbers<[1], [0], [0], [1], [0, 0, 1, 1], [], []>} : vector<256x128xbf16>, vector<128x256xbf16>, vector<256x256xf32> -> vector<256x256xf32>
    %c0_9 = arith.constant 0 : index
    %c0_10 = arith.constant 0 : index
    %12 = vector.load %arg5[%c0_9, %c0_10] : memref<1x256xf32, #tpu.memory_space<vmem>>, vector<1x256xf32>
    %13 = vector.broadcast %12 : vector<1x256xf32> to vector<256x256xf32>
    %14 = arith.addf %11, %13 : vector<256x256xf32>
    %cst_11 = arith.constant 0.000000e+00 : f32
    %15 = vector.broadcast %cst_11 : f32 to vector<256x256xf32>
    %16 = arith.maximumf %14, %15 : vector<256x256xf32>
    %17 = arith.truncf %16 : vector<256x256xf32> to vector<256x256xbf16>
    %c0_12 = arith.constant 0 : index
    %c0_13 = arith.constant 0 : index
    %18 = vector.load %arg6[%c0_12, %c0_13] : memref<256x128xbf16, #tpu.memory_space<vmem>>, vector<256x128xbf16>
    %cst_14 = arith.constant dense<0.000000e+00> : vector<256x128xf32>
    %19 = tpu.matmul %17, %18, %cst_14 {dimension_numbers = #tpu.dot_dimension_numbers<[1], [0], [0], [1], [0, 0, 1, 1], [], []>} : vector<256x256xbf16>, vector<256x128xbf16>, vector<256x128xf32> -> vector<256x128xf32>
    %c0_15 = arith.constant 0 : index
    %c0_16 = arith.constant 0 : index
    %20 = vector.load %arg7[%c0_15, %c0_16] : memref<1x128xf32, #tpu.memory_space<vmem>>, vector<1x128xf32>
    %21 = vector.broadcast %20 : vector<1x128xf32> to vector<256x128xf32>
    %22 = arith.addf %19, %21 : vector<256x128xf32>
    %23 = arith.truncf %22 : vector<256x128xf32> to vector<256x128xbf16>
    %c0_17 = arith.constant 0 : index
    %c0_18 = arith.constant 0 : index
    %24 = vector.load %arg8[%c0_17, %c0_18] : memref<256x128xbf16, #tpu.memory_space<vmem>>, vector<256x128xbf16>
    tpu.vector_store %arg8[%c0_17, %c0_18], %23 {strides = array<i32>} : memref<256x128xbf16, #tpu.memory_space<vmem>>, vector<256x128xbf16>,
    return
  }
  func.func @transform_0(%arg0: i32) -> (i32, i32) {
    %c0_i32 = arith.constant 0 : i32
    %c0_i32_0 = arith.constant 0 : i32
    return %arg0, %c0_i32 : i32, i32
  }
  func.func @transform_1(%arg0: i32) -> (i32, i32) {
    %c0_i32 = arith.constant 0 : i32
    %c0_i32_0 = arith.constant 0 : i32
    %c0_i32_1 = arith.constant 0 : i32
    return %c0_i32, %c0_i32_0 : i32, i32
  }
  func.func @transform_2(%arg0: i32) -> (i32, i32) {
    %c0_i32 = arith.constant 0 : i32
    %c0_i32_0 = arith.constant 0 : i32
    %c0_i32_1 = arith.constant 0 : i32
    return %c0_i32, %c0_i32_0 : i32, i32
  }
  func.func @transform_3(%arg0: i32) -> (i32, i32) {
    %c0_i32 = arith.constant 0 : i32
    %c0_i32_0 = arith.constant 0 : i32
    %c0_i32_1 = arith.constant 0 : i32
    return %c0_i32, %c0_i32_0 : i32, i32
  }
  func.func @transform_4(%arg0: i32) -> (i32, i32) {
    %c0_i32 = arith.constant 0 : i32
    %c0_i32_0 = arith.constant 0 : i32
    %c0_i32_1 = arith.constant 0 : i32
    return %c0_i32, %c0_i32_0 : i32, i32
  }
  func.func @transform_5(%arg0: i32) -> (i32, i32) {
    %c0_i32 = arith.constant 0 : i32
    %c0_i32_0 = arith.constant 0 : i32
    %c0_i32_1 = arith.constant 0 : i32
    return %c0_i32, %c0_i32_0 : i32, i32
  }
  func.func @transform_6(%arg0: i32) -> (i32, i32) {
    %c0_i32 = arith.constant 0 : i32
    %c0_i32_0 = arith.constant 0 : i32
    %c0_i32_1 = arith.constant 0 : i32
    return %c0_i32, %c0_i32_0 : i32, i32
  }
  func.func @transform_7(%arg0: i32) -> (i32, i32) {
    %c0_i32 = arith.constant 0 : i32
    %c0_i32_0 = arith.constant 0 : i32
    return %arg0, %c0_i32 : i32, i32
  }
}

</mosaic_0001>

<llo_original>
// kernel: tpu_custom_call.1
$region0: #{tpu_custom_call.1}
  #allocation0 [shape = 'u32[]', space=smem, size = 0x4, offset = 0x4, fixed_abs, tag = 'smem constant byte address 0x4 - core index']
  #allocation1 [shape = 'u32[144,128]{1,0:T(1,128)}', space=vmem, size = 0x12000, scoped, tag = 'internal scratch']
  %s0 = inlined_call_operand.vmem [shape: f32[512,16], index: 0, kind: input, shape index: {}]
  %s1 = inlined_call_operand.vmem [shape: bf16[16,128], index: 1, kind: input, shape index: {}]
  %s2 = inlined_call_operand.vmem [shape: f32[1,128], index: 2, kind: input, shape index: {}]
  %s3 = inlined_call_operand.vmem [shape: bf16[128,256], index: 3, kind: input, shape index: {}]
  %s4 = inlined_call_operand.vmem [shape: f32[1,256], index: 4, kind: input, shape index: {}]
  %s5 = inlined_call_operand.vmem [shape: bf16[256,128], index: 5, kind: input, shape index: {}]
  %s6 = inlined_call_operand.vmem [shape: f32[1,128], index: 6, kind: input, shape index: {}]
  %s7 = inlined_call_operand.hbm [shape: bf16[512,128], index: 7, kind: output, shape index: {}]
  %s8 = sld [smem:[#allocation0]]
  $region61: #{tpu_custom_call.1} parent=0
    _
  %s10 = ssub.s32 1, %s8
  %s11 = scalar_select 0, %s10, %s8
  $region1: #{tpu_custom_call.1} parent=0
    #allocation2 [shape = 'u8[131072]{0}', space=vmem, size = 0x20000, scoped, tag = 'output window, operand 0']
    #allocation3 [shape = 's32[2]{0}', space=sflag, size = 0x8, scoped, tag = 'scoped memory for tpu_custom_call.1']
    %12 = vsyncpa [#allocation3], 0
    %s13 = scalar_lea.sflag [#allocation3], 1
    %14 = vsyncpa %s13, 0
    loop: start=0, step=1, limit=4
    $region2: #{tpu_custom_call.1} parent=1 // loop_pre_header
      _
    $region3: #{tpu_custom_call.1} parent=1 // loop_header
      %s16 = sphi 0, %s20
      %p17 = scmp.ge.s32.totalorder %s16, 4
      %s26 = sphi 0, %s28
      %s29 = sphi 0, %s26
      %s30 = sphi 0, %s29
      %s46 = sphi 0, %s30
      %s50 = sphi 0, %s50
      %s52 = sphi 0, %s50
      %s53 = sphi 0, %s52
      %s67 = sphi 0, %s53
      %s71 = sphi 0, %s71
      %s73 = sphi 0, %s71
      %s74 = sphi 0, %s73
      %s88 = sphi 0, %s74
      %s92 = sphi 0, %s92
      %s94 = sphi 0, %s92
      %s95 = sphi 0, %s94
      %s109 = sphi 0, %s95
      %s113 = sphi 0, %s113
      %s115 = sphi 0, %s113
      %s116 = sphi 0, %s115
      %s130 = sphi 0, %s116
      %s134 = sphi 0, %s134
      %s136 = sphi 0, %s134
      %s137 = sphi 0, %s136
      %s151 = sphi 0, %s137
      %s155 = sphi 0, %s155
      %s157 = sphi 0, %s155
      %s158 = sphi 0, %s157
      %s172 = sphi 0, %s158
      %s178 = sphi 0, %s180
      %s181 = sphi 0, %s178
      %s182 = sphi 0, %s181
      %s198 = sphi 0, %s182
    $region4: #{tpu_custom_call.1} parent=1 // loop_header_branch
      %19 = sbr.rel (%p17) target = $region8
    $region5: #{tpu_custom_call.1} parent=1 // loop_body
      %s21 = ssub.s32 %s16, 1
      %s22 = ssub.s32 %s16, 2
      %s23 = sadd.s32 %s16, 1
      %s24 = ssub.s32 %s16, %s23
      %p25 = scmp.eq.s32.totalorder %s24, 0
      %s27 = sadd.s32 %s26, 1
      %s28 = scalar_select %p25, %s26, %s27
      %p31 = pneg %p25
      %p32 = scmp.eq.s32.totalorder %s16, 1
      %p33 = por %p31, %p32
      %p34 = scmp.ne.s32.totalorder %s26, %s29
      %p35 = scmp.eq.s32.totalorder %s16, 0
      %p36 = por %p34, %p35
      %p37 = scmp.ne.s32.totalorder %s26, %s29
      %p38 = scmp.eq.s32.totalorder %s21, 1
      %p39 = por %p37, %p38
      %p40 = scmp.ne.s32.totalorder %s29, %s30
      %p41 = scmp.eq.s32.totalorder %s21, 0
      %p42 = por %p40, %p41
      %p43 = scmp.ne.s32.totalorder %s29, %s30
      %p44 = scmp.eq.s32.totalorder %s22, 1
      %p45 = por %p43, %p44
      %p47 = scmp.ne.s32.totalorder %s30, %s46
      %p48 = scmp.eq.s32.totalorder %s22, 0
      %p49 = por %p47, %p48
      %s51 = sadd.s32 %s50, 1
      %p54 = scmp.eq.s32.totalorder %s16, 1
      %p55 = scmp.ne.s32.totalorder %s50, %s52
      %p56 = scmp.eq.s32.totalorder %s16, 0
      %p57 = por %p55, %p56
      %p58 = scmp.ne.s32.totalorder %s50, %s52
      %p59 = scmp.eq.s32.totalorder %s21, 1
      %p60 = por %p58, %p59
      %p61 = scmp.ne.s32.totalorder %s52, %s53
      %p62 = scmp.eq.s32.totalorder %s21, 0
      %p63 = por %p61, %p62
      %p64 = scmp.ne.s32.totalorder %s52, %s53
      %p65 = scmp.eq.s32.totalorder %s22, 1
      %p66 = por %p64, %p65
      %p68 = scmp.ne.s32.totalorder %s53, %s67
      %p69 = scmp.eq.s32.totalorder %s22, 0
      %p70 = por %p68, %p69
      %s72 = sadd.s32 %s71, 1
      %p75 = scmp.eq.s32.totalorder %s16, 1
      %p76 = scmp.ne.s32.totalorder %s71, %s73
      %p77 = scmp.eq.s32.totalorder %s16, 0
      %p78 = por %p76, %p77
      %p79 = scmp.ne.s32.totalorder %s71, %s73
      %p80 = scmp.eq.s32.totalorder %s21, 1
      %p81 = por %p79, %p80
      %p82 = scmp.ne.s32.totalorder %s73, %s74
      %p83 = scmp.eq.s32.totalorder %s21, 0
      %p84 = por %p82, %p83
      %p85 = scmp.ne.s32.totalorder %s73, %s74
      %p86 = scmp.eq.s32.totalorder %s22, 1
      %p87 = por %p85, %p86
      %p89 = scmp.ne.s32.totalorder %s74, %s88
      %p90 = scmp.eq.s32.totalorder %s22, 0
      %p91 = por %p89, %p90
      %s93 = sadd.s32 %s92, 1
      %p96 = scmp.eq.s32.totalorder %s16, 1
      %p97 = scmp.ne.s32.totalorder %s92, %s94
      %p98 = scmp.eq.s32.totalorder %s16, 0
      %p99 = por %p97, %p98
      %p100 = scmp.ne.s32.totalorder %s92, %s94
      %p101 = scmp.eq.s32.totalorder %s21, 1
      %p102 = por %p100, %p101
      %p103 = scmp.ne.s32.totalorder %s94, %s95
      %p104 = scmp.eq.s32.totalorder %s21, 0
      %p105 = por %p103, %p104
      %p106 = scmp.ne.s32.totalorder %s94, %s95
      %p107 = scmp.eq.s32.totalorder %s22, 1
      %p108 = por %p106, %p107
      %p110 = scmp.ne.s32.totalorder %s95, %s109
      %p111 = scmp.eq.s32.totalorder %s22, 0
      %p112 = por %p110, %p111
      %s114 = sadd.s32 %s113, 1
      %p117 = scmp.eq.s32.totalorder %s16, 1
      %p118 = scmp.ne.s32.totalorder %s113, %s115
      %p119 = scmp.eq.s32.totalorder %s16, 0
      %p120 = por %p118, %p119
      %p121 = scmp.ne.s32.totalorder %s113, %s115
      %p122 = scmp.eq.s32.totalorder %s21, 1
      %p123 = por %p121, %p122
      %p124 = scmp.ne.s32.totalorder %s115, %s116
      %p125 = scmp.eq.s32.totalorder %s21, 0
      %p126 = por %p124, %p125
      %p127 = scmp.ne.s32.totalorder %s115, %s116
      %p128 = scmp.eq.s32.totalorder %s22, 1
      %p129 = por %p127, %p128
      %p131 = scmp.ne.s32.totalorder %s116, %s130
      %p132 = scmp.eq.s32.totalorder %s22, 0
      %p133 = por %p131, %p132
      %s135 = sadd.s32 %s134, 1
      %p138 = scmp.eq.s32.totalorder %s16, 1
      %p139 = scmp.ne.s32.totalorder %s134, %s136
      %p140 = scmp.eq.s32.totalorder %s16, 0
      %p141 = por %p139, %p140
      %p142 = scmp.ne.s32.totalorder %s134, %s136
      %p143 = scmp.eq.s32.totalorder %s21, 1
      %p144 = por %p142, %p143
      %p145 = scmp.ne.s32.totalorder %s136, %s137
      %p146 = scmp.eq.s32.totalorder %s21, 0
      %p147 = por %p145, %p146
      %p148 = scmp.ne.s32.totalorder %s136, %s137
      %p149 = scmp.eq.s32.totalorder %s22, 1
      %p150 = por %p148, %p149
      %p152 = scmp.ne.s32.totalorder %s137, %s151
      %p153 = scmp.eq.s32.totalorder %s22, 0
      %p154 = por %p152, %p153
      %s156 = sadd.s32 %s155, 1
      %p159 = scmp.eq.s32.totalorder %s16, 1
      %p160 = scmp.ne.s32.totalorder %s155, %s157
      %p161 = scmp.eq.s32.totalorder %s16, 0
      %p162 = por %p160, %p161
      %p163 = scmp.ne.s32.totalorder %s155, %s157
      %p164 = scmp.eq.s32.totalorder %s21, 1
      %p165 = por %p163, %p164
      %p166 = scmp.ne.s32.totalorder %s157, %s158
      %p167 = scmp.eq.s32.totalorder %s21, 0
      %p168 = por %p166, %p167
      %p169 = scmp.ne.s32.totalorder %s157, %s158
      %p170 = scmp.eq.s32.totalorder %s22, 1
      %p171 = por %p169, %p170
      %p173 = scmp.ne.s32.totalorder %s158, %s172
      %p174 = scmp.eq.s32.totalorder %s22, 0
      %p175 = por %p173, %p174
      %s176 = ssub.s32 %s16, %s23
      %p177 = scmp.eq.s32.totalorder %s176, 0
      %s179 = sadd.s32 %s178, 1
      %s180 = scalar_select %p177, %s178, %s179
      %p183 = pneg %p177
      %p184 = scmp.eq.s32.totalorder %s16, 1
      %p185 = por %p183, %p184
      %p186 = scmp.ne.s32.totalorder %s178, %s181
      %p187 = scmp.eq.s32.totalorder %s16, 0
      %p188 = por %p186, %p187
      %p189 = scmp.ne.s32.totalorder %s178, %s181
      %p190 = scmp.eq.s32.totalorder %s21, 1
      %p191 = por %p189, %p190
      %p192 = scmp.ne.s32.totalorder %s181, %s182
      %p193 = scmp.eq.s32.totalorder %s21, 0
      %p194 = por %p192, %p193
      %p195 = scmp.ne.s32.totalorder %s181, %s182
      %p196 = scmp.eq.s32.totalorder %s22, 1
      %p197 = por %p195, %p196
      %p199 = scmp.ne.s32.totalorder %s182, %s198
      %p200 = scmp.eq.s32.totalorder %s22, 0
      %p201 = por %p199, %p200
      %p202 = scmp.le.s32.totalorder 1, %s16
      %p203 = scmp.lt.s32.totalorder %s16, 3
      %p204 = pnand %p202, %p203
      %p205 = pneg %p204
      // Predicated region
      $region9: #{tpu_custom_call.1} parent=5 // pred_check
        _
      $region10: #{tpu_custom_call.1} parent=5 // pred_check_branch
        %207 = sbr.rel (%p204) target = $region12
      $region11: #{tpu_custom_call.1} parent=5 // pred_region
        %s208 = ssub.s32 %s16, 1
        // Predicated region
        $region13: #{tpu_custom_call.1} parent=11 // pred_check
          %p209 = pneg %p63
        $region14: #{tpu_custom_call.1} parent=11 // pred_check_branch
          %211 = sbr.rel (%p209) target = $region16
        $region15: #{tpu_custom_call.1} parent=11 // pred_region
          _
        $region16: #{tpu_custom_call.1} parent=11 // pred_fallthru
          _
        // Predicated region
        $region17: #{tpu_custom_call.1} parent=11 // pred_check
          %p212 = pneg %p84
        $region18: #{tpu_custom_call.1} parent=11 // pred_check_branch
          %214 = sbr.rel (%p212) target = $region20
        $region19: #{tpu_custom_call.1} parent=11 // pred_region
          _
        $region20: #{tpu_custom_call.1} parent=11 // pred_fallthru
          _
        // Predicated region
        $region21: #{tpu_custom_call.1} parent=11 // pred_check
          %p215 = pneg %p105
        $region22: #{tpu_custom_call.1} parent=11 // pred_check_branch
          %217 = sbr.rel (%p215) target = $region24
        $region23: #{tpu_custom_call.1} parent=11 // pred_region
          _
        $region24: #{tpu_custom_call.1} parent=11 // pred_fallthru
          _
        // Predicated region
        $region25: #{tpu_custom_call.1} parent=11 // pred_check
          %p218 = pneg %p126
        $region26: #{tpu_custom_call.1} parent=11 // pred_check_branch
          %220 = sbr.rel (%p218) target = $region28
        $region27: #{tpu_custom_call.1} parent=11 // pred_region
          _
        $region28: #{tpu_custom_call.1} parent=11 // pred_fallthru
          _
        // Predicated region
        $region29: #{tpu_custom_call.1} parent=11 // pred_check
          %p221 = pneg %p147
        $region30: #{tpu_custom_call.1} parent=11 // pred_check_branch
          %223 = sbr.rel (%p221) target = $region32
        $region31: #{tpu_custom_call.1} parent=11 // pred_region
          _
        $region32: #{tpu_custom_call.1} parent=11 // pred_fallthru
          _
        // Predicated region
        $region33: #{tpu_custom_call.1} parent=11 // pred_check
          %p224 = pneg %p168
        $region34: #{tpu_custom_call.1} parent=11 // pred_check_branch
          %226 = sbr.rel (%p224) target = $region36
        $region35: #{tpu_custom_call.1} parent=11 // pred_region
          _
        $region36: #{tpu_custom_call.1} parent=11 // pred_fallthru
          _
      $region12: #{tpu_custom_call.1} parent=5 // pred_fallthru
        _
      %p227 = scmp.lt.s32.totalorder %s16, 2
      // Predicated region
      $region37: #{tpu_custom_call.1} parent=5 // pred_check
        %p228 = pneg %p227
      $region38: #{tpu_custom_call.1} parent=5 // pred_check_branch
        %230 = sbr.rel (%p228) target = $region40
      $region39: #{tpu_custom_call.1} parent=5 // pred_region
        // Predicated region
        $region41: #{tpu_custom_call.1} parent=39 // pred_check
          %p231 = pneg %p36
        $region42: #{tpu_custom_call.1} parent=39 // pred_check_branch
          %233 = sbr.rel (%p231) target = $region44
        $region43: #{tpu_custom_call.1} parent=39 // pred_region
          %s234 = smul.u32 32, %s16
          %p235 = scmp.lt.s32.totalorder %s234, 63
          %s236 = scalar_select %p235, %s234, 63
          %s237 = smul.addr %s236, 8
          %s238 = scalar_lea.vmem %s0, %s237
          %s239 = smul.u32 32, %s16
        $region44: #{tpu_custom_call.1} parent=39 // pred_fallthru
          _
      $region40: #{tpu_custom_call.1} parent=5 // pred_fallthru
        _
      %p240 = scmp.le.s32.totalorder 1, %s16
      %p241 = scmp.lt.s32.totalorder %s16, 3
      %p242 = pnand %p240, %p241
      %p243 = pneg %p242
      // Predicated region
      $region45: #{tpu_custom_call.1} parent=5 // pred_check
        _
      $region46: #{tpu_custom_call.1} parent=5 // pred_check_branch
        %245 = sbr.rel (%p242) target = $region48
      $region47: #{tpu_custom_call.1} parent=5 // pred_region
        %s246 = ssub.s32 %s16, 1
        %s247 = smul.u32 32, %s21
        %p248 = scmp.lt.s32.totalorder %s247, 63
        %s249 = scalar_select %p248, %s247, 63
        %s250 = smul.addr %s249, 8
        %s251 = scalar_lea.vmem %s0, %s250
        %p252 = pneg %p42
        %p253 = pneg %p39
        %p254 = pneg %p63
        %p255 = pneg %p60
        %p256 = pneg %p84
        %p257 = pneg %p81
        %p258 = pneg %p105
        %p259 = pneg %p102
        %p260 = pneg %p126
        %p261 = pneg %p123
        %p262 = pneg %p147
        %p263 = pneg %p144
        %p264 = pneg %p168
        %p265 = pneg %p165
        %p266 = pneg %p194
        %p267 = pneg %p191
        %s268 = sand.u32 %s181, 1
        %s269 = scalar_lea.sflag [#allocation3], %s268
        %s270 = sand.u32 %s181, 1
        %s271 = smul.addr %s270, 128
        %s272 = scalar_lea.vmem [#allocation2], %s271
        %s273 = smul.u32 32, %s21
        %p274 = scmp.lt.s32.totalorder %s273, 63
        %s275 = scalar_select %p274, %s273, 63
        %s276 = smul.addr %s275, 8
        %s277 = scalar_lea.vmem %s0, %s276
        %s278 = smul.u32 32, %s21
        %s279 = smul.u32 32, %s21
        %v281 = vld [vmem:[%s277] sm:$0xff]
        %v282 = vld [vmem:[%s277 + $0x8] sm:$0xff]
        %v283 = vld [vmem:[%s277 + $0x10] sm:$0xff]
        %v284 = vld [vmem:[%s277 + $0x18] sm:$0xff]
        %v285 = vld [vmem:[%s277 + $0x20] sm:$0xff]
        %v286 = vld [vmem:[%s277 + $0x28] sm:$0xff]
        %v287 = vld [vmem:[%s277 + $0x30] sm:$0xff]
        %v288 = vld [vmem:[%s277 + $0x38] sm:$0xff]
        %v289 = vld [vmem:[%s277 + $0x40] sm:$0xff]
        %v290 = vld [vmem:[%s277 + $0x48] sm:$0xff]
        %v291 = vld [vmem:[%s277 + $0x50] sm:$0xff]
        %v292 = vld [vmem:[%s277 + $0x58] sm:$0xff]
        %v293 = vld [vmem:[%s277 + $0x60] sm:$0xff]
        %v294 = vld [vmem:[%s277 + $0x68] sm:$0xff]
        %v295 = vld [vmem:[%s277 + $0x70] sm:$0xff]
        %v296 = vld [vmem:[%s277 + $0x78] sm:$0xff]
        %v297 = vld [vmem:[%s277 + $0x80] sm:$0xff]
        %v298 = vld [vmem:[%s277 + $0x88] sm:$0xff]
        %v299 = vld [vmem:[%s277 + $0x90] sm:$0xff]
        %v300 = vld [vmem:[%s277 + $0x98] sm:$0xff]
        %v301 = vld [vmem:[%s277 + $0xa0] sm:$0xff]
        %v302 = vld [vmem:[%s277 + $0xa8] sm:$0xff]
        %v303 = vld [vmem:[%s277 + $0xb0] sm:$0xff]
        %v304 = vld [vmem:[%s277 + $0xb8] sm:$0xff]
        %v305 = vld [vmem:[%s277 + $0xc0] sm:$0xff]
        %v306 = vld [vmem:[%s277 + $0xc8] sm:$0xff]
        %v307 = vld [vmem:[%s277 + $0xd0] sm:$0xff]
        %v308 = vld [vmem:[%s277 + $0xd8] sm:$0xff]
        %v309 = vld [vmem:[%s277 + $0xe0] sm:$0xff]
        %v310 = vld [vmem:[%s277 + $0xe8] sm:$0xff]
        %v311 = vld [vmem:[%s277 + $0xf0] sm:$0xff]
        %v312 = vld [vmem:[%s277 + $0xf8] sm:$0xff]
        %v313 = vpack.c.bf16 %v282, %v281
        %v314 = vpack.c.bf16 %v284, %v283
        %v315 = vpack.c.bf16 %v286, %v285
        %v316 = vpack.c.bf16 %v288, %v287
        %v317 = vpack.c.bf16 %v290, %v289
        %v318 = vpack.c.bf16 %v292, %v291
        %v319 = vpack.c.bf16 %v294, %v293
        %v320 = vpack.c.bf16 %v296, %v295
        %v321 = vpack.c.bf16 %v298, %v297
        %v322 = vpack.c.bf16 %v300, %v299
        %v323 = vpack.c.bf16 %v302, %v301
        %v324 = vpack.c.bf16 %v304, %v303
        %v325 = vpack.c.bf16 %v306, %v305
        %v326 = vpack.c.bf16 %v308, %v307
        %v327 = vpack.c.bf16 %v310, %v309
        %v328 = vpack.c.bf16 %v312, %v311
        %v329 = vld [vmem:[%s1] sm:$0xf]
        %v330 = vld [vmem:[%s1 + $0x4] sm:$0xf]
        %v331 = vld [vmem:[%s2] sm:$0x1]
        %v333 = vlaneseq
        %v334 = vshrl.u32 %v333, 7
        %v335 = vsub.s32 0, %v334
        %v336 = vrot.slane %v331, %v335
        %v340 = vunpack.c.l.b16 %v329
        %v341 = vunpack.c.l.b16 %v330
        %v342 = vpack.c.b16 %v341, %v340
        %vm344 = vcmask 130048
        %v346 = vsel %vm344, %v313, 0
        %v349 = vsel %vm344, %v314, 0
        %v352 = vsel %vm344, %v315, 0
        %v355 = vsel %vm344, %v316, 0
        %v358 = vsel %vm344, %v317, 0
        %v361 = vsel %vm344, %v318, 0
        %v364 = vsel %vm344, %v319, 0
        %v367 = vsel %vm344, %v320, 0
        %v370 = vsel %vm344, %v321, 0
        %v373 = vsel %vm344, %v322, 0
        %v376 = vsel %vm344, %v323, 0
        %v379 = vsel %vm344, %v324, 0
        %v382 = vsel %vm344, %v325, 0
        %v385 = vsel %vm344, %v326, 0
        %v388 = vsel %vm344, %v327, 0
        %v391 = vsel %vm344, %v328, 0
        %393 = vmatprep.subr.bf16.mxu0 0
        %394 = vmatpush1.bf16.msra.mxu0 0
        %395 = vmatprep.subr.bf16.mxu0 0
        %396 = vmatpush1.bf16.msra.mxu0 0
        %397 = vmatprep.subr.bf16.mxu0 0
        %398 = vmatpush1.bf16.msra.mxu0 0
        %399 = vmatprep.subr.bf16.mxu0 0
        %400 = vmatpush1.bf16.msra.mxu0 0
        %401 = vmatprep.subr.bf16.mxu0 0
        %402 = vmatpush1.bf16.msra.mxu0 0
        %403 = vmatprep.subr.bf16.mxu0 0
        %404 = vmatpush1.bf16.msra.mxu0 0
        %405 = vmatprep.subr.bf16.mxu0 0
        %406 = vmatpush1.bf16.msra.mxu0 0
        %407 = vmatprep.subr.bf16.mxu0 0
        %408 = vmatpush1.bf16.msra.mxu0 %v342
        %409 = vmatprep.subr.bf16.mxu0 0
        %410 = vmatpush2.bf16.msra.mxu0 0
        %411 = vmatprep.subr.bf16.mxu0 0
        %412 = vmatpush2.bf16.msra.mxu0 0
        %413 = vmatprep.subr.bf16.mxu0 0
        %414 = vmatpush2.bf16.msra.mxu0 0
        %415 = vmatprep.subr.bf16.mxu0 0
        %416 = vmatpush2.bf16.msra.mxu0 0
        %417 = vmatprep.subr.bf16.mxu0 0
        %418 = vmatpush2.bf16.msra.mxu0 0
        %419 = vmatprep.subr.bf16.mxu0 0
        %420 = vmatpush2.bf16.msra.mxu0 0
        %421 = vmatprep.subr.bf16.mxu0 0
        %422 = vmatpush2.bf16.msra.mxu0 0
        %423 = vmatprep.subr.bf16.mxu0 0
        %424 = vmatpush2.bf16.msra.mxu0 0
        %425 = vmatprep.mubr.bf16.mxu0 0
        %426 = vmatmul.mubr.bf16.gmra.mxu0 %v346
        %v427 = vpop.f32.mrf.mxu0
        %v428 = vadd.f32 %v336, %v427
        %v429 = vpop.f32.mrf.mxu0
        %v430 = vpop.f32.mrf.mxu0
        %v431 = vadd.f32 %v336, %v430
        %v432 = vpop.f32.mrf.mxu0
        %433 = vmatprep.mubr.bf16.mxu0 0
        %434 = vmatmul.mubr.bf16.gmra.mxu0 %v349
        %v435 = vpop.f32.mrf.mxu0
        %v436 = vadd.f32 %v336, %v435
        %v437 = vpop.f32.mrf.mxu0
        %v438 = vpop.f32.mrf.mxu0
        %v439 = vadd.f32 %v336, %v438
        %v440 = vpop.f32.mrf.mxu0
        %441 = vmatprep.mubr.bf16.mxu0 0
        %442 = vmatmul.mubr.bf16.gmra.mxu0 %v352
        %v443 = vpop.f32.mrf.mxu0
        %v444 = vadd.f32 %v336, %v443
        %v445 = vpop.f32.mrf.mxu0
        %v446 = vpop.f32.mrf.mxu0
        %v447 = vadd.f32 %v336, %v446
        %v448 = vpop.f32.mrf.mxu0
        %449 = vmatprep.mubr.bf16.mxu0 0
        %450 = vmatmul.mubr.bf16.gmra.mxu0 %v355
        %v451 = vpop.f32.mrf.mxu0
        %v452 = vadd.f32 %v336, %v451
        %v453 = vpop.f32.mrf.mxu0
        %v454 = vpop.f32.mrf.mxu0
        %v455 = vadd.f32 %v336, %v454
        %v456 = vpop.f32.mrf.mxu0
        %457 = vmatprep.mubr.bf16.mxu0 0
        %458 = vmatmul.mubr.bf16.gmra.mxu0 %v358
        %v459 = vpop.f32.mrf.mxu0
        %v460 = vadd.f32 %v336, %v459
        %v461 = vpop.f32.mrf.mxu0
        %v462 = vpop.f32.mrf.mxu0
        %v463 = vadd.f32 %v336, %v462
        %v464 = vpop.f32.mrf.mxu0
        %465 = vmatprep.mubr.bf16.mxu0 0
        %466 = vmatmul.mubr.bf16.gmra.mxu0 %v361
        %v467 = vpop.f32.mrf.mxu0
        %v468 = vadd.f32 %v336, %v467
        %v469 = vpop.f32.mrf.mxu0
        %v470 = vpop.f32.mrf.mxu0
        %v471 = vadd.f32 %v336, %v470
        %v472 = vpop.f32.mrf.mxu0
        %473 = vmatprep.mubr.bf16.mxu0 0
        %474 = vmatmul.mubr.bf16.gmra.mxu0 %v364
        %v475 = vpop.f32.mrf.mxu0
        %v476 = vadd.f32 %v336, %v475
        %v477 = vpop.f32.mrf.mxu0
        %v478 = vpop.f32.mrf.mxu0
        %v479 = vadd.f32 %v336, %v478
        %v480 = vpop.f32.mrf.mxu0
        %481 = vmatprep.mubr.bf16.mxu0 0
        %482 = vmatmul.mubr.bf16.gmra.mxu0 %v367
        %v483 = vpop.f32.mrf.mxu0
        %v484 = vadd.f32 %v336, %v483
        %v485 = vpop.f32.mrf.mxu0
        %v486 = vpop.f32.mrf.mxu0
        %v487 = vadd.f32 %v336, %v486
        %v488 = vpop.f32.mrf.mxu0
        %489 = vmatprep.mubr.bf16.mxu0 0
        %490 = vmatmul.mubr.bf16.gmra.mxu0 %v370
        %v491 = vpop.f32.mrf.mxu0
        %v492 = vadd.f32 %v336, %v491
        %v493 = vpop.f32.mrf.mxu0
        %v494 = vpop.f32.mrf.mxu0
        %v495 = vadd.f32 %v336, %v494
        %v496 = vpop.f32.mrf.mxu0
        %497 = vmatprep.mubr.bf16.mxu0 0
        %498 = vmatmul.mubr.bf16.gmra.mxu0 %v373
        %v499 = vpop.f32.mrf.mxu0
        %v500 = vadd.f32 %v336, %v499
        %v501 = vpop.f32.mrf.mxu0
        %v502 = vpop.f32.mrf.mxu0
        %v503 = vadd.f32 %v336, %v502
        %v504 = vpop.f32.mrf.mxu0
        %505 = vmatprep.mubr.bf16.mxu0 0
        %506 = vmatmul.mubr.bf16.gmra.mxu0 %v376
        %v507 = vpop.f32.mrf.mxu0
        %v508 = vadd.f32 %v336, %v507
        %v509 = vpop.f32.mrf.mxu0
        %v510 = vpop.f32.mrf.mxu0
        %v511 = vadd.f32 %v336, %v510
        %v512 = vpop.f32.mrf.mxu0
        %513 = vmatprep.mubr.bf16.mxu0 0
        %514 = vmatmul.mubr.bf16.gmra.mxu0 %v379
        %v515 = vpop.f32.mrf.mxu0
        %v516 = vadd.f32 %v336, %v515
        %v517 = vpop.f32.mrf.mxu0
        %v518 = vpop.f32.mrf.mxu0
        %v519 = vadd.f32 %v336, %v518
        %v520 = vpop.f32.mrf.mxu0
        %521 = vmatprep.mubr.bf16.mxu0 0
        %522 = vmatmul.mubr.bf16.gmra.mxu0 %v382
        %v523 = vpop.f32.mrf.mxu0
        %v524 = vadd.f32 %v336, %v523
        %v525 = vpop.f32.mrf.mxu0
        %v526 = vpop.f32.mrf.mxu0
        %v527 = vadd.f32 %v336, %v526
        %v528 = vpop.f32.mrf.mxu0
        %529 = vmatprep.mubr.bf16.mxu0 0
        %530 = vmatmul.mubr.bf16.gmra.mxu0 %v385
        %v531 = vpop.f32.mrf.mxu0
        %v532 = vadd.f32 %v336, %v531
        %v533 = vpop.f32.mrf.mxu0
        %v534 = vpop.f32.mrf.mxu0
        %v535 = vadd.f32 %v336, %v534
        %v536 = vpop.f32.mrf.mxu0
        %537 = vmatprep.mubr.bf16.mxu0 0
        %538 = vmatmul.mubr.bf16.gmra.mxu0 %v388
        %v539 = vpop.f32.mrf.mxu0
        %v540 = vadd.f32 %v336, %v539
        %v541 = vpop.f32.mrf.mxu0
        %v542 = vpop.f32.mrf.mxu0
        %v543 = vadd.f32 %v336, %v542
        %v544 = vpop.f32.mrf.mxu0
        %545 = vmatprep.mubr.bf16.mxu0 0
        %546 = vmatmul.mubr.bf16.gmra.mxu0 %v391
        %v547 = vpop.f32.mrf.mxu0
        %v548 = vadd.f32 %v336, %v547
        %v549 = vpop.f32.mrf.mxu0
        %v550 = vpop.f32.mrf.mxu0
        %v551 = vadd.f32 %v336, %v550
        %v552 = vpop.f32.mrf.mxu0
        %553 = vdwg.mxu0
        %v554 = vmax.f32 %v428, 0.0
        %v555 = vmax.f32 %v431, 0.0
        %v556 = vmax.f32 %v436, 0.0
        %v557 = vmax.f32 %v439, 0.0
        %v558 = vmax.f32 %v444, 0.0
        %v559 = vmax.f32 %v447, 0.0
        %v560 = vmax.f32 %v452, 0.0
        %v561 = vmax.f32 %v455, 0.0
        %v562 = vmax.f32 %v460, 0.0
        %v563 = vmax.f32 %v463, 0.0
        %v564 = vmax.f32 %v468, 0.0
        %v565 = vmax.f32 %v471, 0.0
        %v566 = vmax.f32 %v476, 0.0
        %v567 = vmax.f32 %v479, 0.0
        %v568 = vmax.f32 %v484, 0.0
        %v569 = vmax.f32 %v487, 0.0
        %v570 = vmax.f32 %v492, 0.0
        %v571 = vmax.f32 %v495, 0.0
        %v572 = vmax.f32 %v500, 0.0
        %v573 = vmax.f32 %v503, 0.0
        %v574 = vmax.f32 %v508, 0.0
        %v575 = vmax.f32 %v511, 0.0
        %v576 = vmax.f32 %v516, 0.0
        %v577 = vmax.f32 %v519, 0.0
        %v578 = vmax.f32 %v524, 0.0
        %v579 = vmax.f32 %v527, 0.0
        %v580 = vmax.f32 %v532, 0.0
        %v581 = vmax.f32 %v535, 0.0
        %v582 = vmax.f32 %v540, 0.0
        %v583 = vmax.f32 %v543, 0.0
        %v584 = vmax.f32 %v548, 0.0
        %v585 = vmax.f32 %v551, 0.0
        %v586 = vpack.c.bf16 %v555, %v554
        %v587 = vpack.c.bf16 %v557, %v556
        %v588 = vpack.c.bf16 %v559, %v558
        %v589 = vpack.c.bf16 %v561, %v560
        %v590 = vpack.c.bf16 %v563, %v562
        %v591 = vpack.c.bf16 %v565, %v564
        %v592 = vpack.c.bf16 %v567, %v566
        %v593 = vpack.c.bf16 %v569, %v568
        %v594 = vpack.c.bf16 %v571, %v570
        %v595 = vpack.c.bf16 %v573, %v572
        %v596 = vpack.c.bf16 %v575, %v574
        %v597 = vpack.c.bf16 %v577, %v576
        %v598 = vpack.c.bf16 %v579, %v578
        %v599 = vpack.c.bf16 %v581, %v580
        %v600 = vpack.c.bf16 %v583, %v582
        %v601 = vpack.c.bf16 %v585, %v584
        %v602 = vld [vmem:[%s3] sm:$0xff]
        %v603 = vld [vmem:[%s3 + $0x8] sm:$0xff]
        %v604 = vld [vmem:[%s3 + $0x10] sm:$0xff]
        %v605 = vld [vmem:[%s3 + $0x18] sm:$0xff]
        %v606 = vld [vmem:[%s3 + $0x20] sm:$0xff]
        %v607 = vld [vmem:[%s3 + $0x28] sm:$0xff]
        %v608 = vld [vmem:[%s3 + $0x30] sm:$0xff]
        %v609 = vld [vmem:[%s3 + $0x38] sm:$0xff]
        %v610 = vld [vmem:[%s3 + $0x40] sm:$0xff]
        %v611 = vld [vmem:[%s3 + $0x48] sm:$0xff]
        %v612 = vld [vmem:[%s3 + $0x50] sm:$0xff]
        %v613 = vld [vmem:[%s3 + $0x58] sm:$0xff]
        %v614 = vld [vmem:[%s3 + $0x60] sm:$0xff]
        %v615 = vld [vmem:[%s3 + $0x68] sm:$0xff]
        %v616 = vld [vmem:[%s3 + $0x70] sm:$0xff]
        %v617 = vld [vmem:[%s3 + $0x78] sm:$0xff]
        %v618 = vld [vmem:[%s4] sm:$0x3]
        %v620 = vlaneseq
        %v621 = vshrl.u32 %v620, 7
        %v622 = vsub.s32 0, %v621
        %v623 = vrot.slane %v618, %v622
        %v624 = vlaneseq
        %v625 = vshrl.u32 %v624, 7
        %v626 = vsub.s32 1, %v625
        %v627 = vrot.slane %v618, %v626
        %v646 = vunpack.c.l.b16 %v602
        %v647 = vunpack.c.h.b16 %v602
        %v648 = vunpack.c.l.b16 %v603
        %v649 = vunpack.c.h.b16 %v603
        %v650 = vunpack.c.l.b16 %v604
        %v651 = vunpack.c.h.b16 %v604
        %v652 = vunpack.c.l.b16 %v605
        %v653 = vunpack.c.h.b16 %v605
        %v654 = vunpack.c.l.b16 %v606
        %v655 = vunpack.c.h.b16 %v606
        %v656 = vunpack.c.l.b16 %v607
        %v657 = vunpack.c.h.b16 %v607
        %v658 = vunpack.c.l.b16 %v608
        %v659 = vunpack.c.h.b16 %v608
        %v660 = vunpack.c.l.b16 %v609
        %v661 = vunpack.c.h.b16 %v609
        %v662 = vunpack.c.l.b16 %v610
        %v663 = vunpack.c.h.b16 %v610
        %v664 = vunpack.c.l.b16 %v611
        %v665 = vunpack.c.h.b16 %v611
        %v666 = vunpack.c.l.b16 %v612
        %v667 = vunpack.c.h.b16 %v612
        %v668 = vunpack.c.l.b16 %v613
        %v669 = vunpack.c.h.b16 %v613
        %v670 = vunpack.c.l.b16 %v614
        %v671 = vunpack.c.h.b16 %v614
        %v672 = vunpack.c.l.b16 %v615
        %v673 = vunpack.c.h.b16 %v615
        %v674 = vunpack.c.l.b16 %v616
        %v675 = vunpack.c.h.b16 %v616
        %v676 = vunpack.c.l.b16 %v617
        %v677 = vunpack.c.h.b16 %v617
        %v678 = vpack.c.b16 %v648, %v646
        %v679 = vpack.c.b16 %v649, %v647
        %v680 = vpack.c.b16 %v652, %v650
        %v681 = vpack.c.b16 %v653, %v651
        %v682 = vpack.c.b16 %v656, %v654
        %v683 = vpack.c.b16 %v657, %v655
        %v684 = vpack.c.b16 %v660, %v658
        %v685 = vpack.c.b16 %v661, %v659
        %v686 = vpack.c.b16 %v664, %v662
        %v687 = vpack.c.b16 %v665, %v663
        %v688 = vpack.c.b16 %v668, %v666
        %v689 = vpack.c.b16 %v669, %v667
        %v690 = vpack.c.b16 %v672, %v670
        %v691 = vpack.c.b16 %v673, %v671
        %v692 = vpack.c.b16 %v676, %v674
        %v693 = vpack.c.b16 %v677, %v675
        %710 = vmatprep.subr.bf16.mxu0 %v693
        %711 = vmatpush1.bf16.msra.mxu0 %v692
        %712 = vmatprep.subr.bf16.mxu0 %v691
        %713 = vmatpush1.bf16.msra.mxu0 %v690
        %714 = vmatprep.subr.bf16.mxu0 %v689
        %715 = vmatpush1.bf16.msra.mxu0 %v688
        %716 = vmatprep.subr.bf16.mxu0 %v687
        %717 = vmatpush1.bf16.msra.mxu0 %v686
        %718 = vmatprep.subr.bf16.mxu0 %v685
        %719 = vmatpush1.bf16.msra.mxu0 %v684
        %720 = vmatprep.subr.bf16.mxu0 %v683
        %721 = vmatpush1.bf16.msra.mxu0 %v682
        %722 = vmatprep.subr.bf16.mxu0 %v681
        %723 = vmatpush1.bf16.msra.mxu0 %v680
        %724 = vmatprep.subr.bf16.mxu0 %v679
        %725 = vmatpush1.bf16.msra.mxu0 %v678
        %726 = vmatprep.subr.bf16.mxu0 0
        %727 = vmatpush2.bf16.msra.mxu0 0
        %728 = vmatprep.subr.bf16.mxu0 0
        %729 = vmatpush2.bf16.msra.mxu0 0
        %730 = vmatprep.subr.bf16.mxu0 0
        %731 = vmatpush2.bf16.msra.mxu0 0
        %732 = vmatprep.subr.bf16.mxu0 0
        %733 = vmatpush2.bf16.msra.mxu0 0
        %734 = vmatprep.subr.bf16.mxu0 0
        %735 = vmatpush2.bf16.msra.mxu0 0
        %736 = vmatprep.subr.bf16.mxu0 0
        %737 = vmatpush2.bf16.msra.mxu0 0
        %738 = vmatprep.subr.bf16.mxu0 0
        %739 = vmatpush2.bf16.msra.mxu0 0
        %740 = vmatprep.subr.bf16.mxu0 0
        %741 = vmatpush2.bf16.msra.mxu0 0
        %742 = vmatprep.mubr.bf16.mxu0 0
        %743 = vmatmul.mubr.bf16.gmra.mxu0 %v586
        %v744 = vpop.f32.mrf.mxu0
        %v745 = vadd.f32 %v623, %v744
        %v746 = vpop.f32.mrf.mxu0
        %v747 = vadd.f32 %v627, %v746
        %v748 = vpop.f32.mrf.mxu0
        %v749 = vadd.f32 %v623, %v748
        %v750 = vpop.f32.mrf.mxu0
        %v751 = vadd.f32 %v627, %v750
        %752 = vmatprep.mubr.bf16.mxu0 0
        %753 = vmatmul.mubr.bf16.gmra.mxu0 %v587
        %v754 = vpop.f32.mrf.mxu0
        %v755 = vadd.f32 %v623, %v754
        %v756 = vpop.f32.mrf.mxu0
        %v757 = vadd.f32 %v627, %v756
        %v758 = vpop.f32.mrf.mxu0
        %v759 = vadd.f32 %v623, %v758
        %v760 = vpop.f32.mrf.mxu0
        %v761 = vadd.f32 %v627, %v760
        %762 = vmatprep.mubr.bf16.mxu0 0
        %763 = vmatmul.mubr.bf16.gmra.mxu0 %v588
        %v764 = vpop.f32.mrf.mxu0
        %v765 = vadd.f32 %v623, %v764
        %v766 = vpop.f32.mrf.mxu0
        %v767 = vadd.f32 %v627, %v766
        %v768 = vpop.f32.mrf.mxu0
        %v769 = vadd.f32 %v623, %v768
        %v770 = vpop.f32.mrf.mxu0
        %v771 = vadd.f32 %v627, %v770
        %772 = vmatprep.mubr.bf16.mxu0 0
        %773 = vmatmul.mubr.bf16.gmra.mxu0 %v589
        %v774 = vpop.f32.mrf.mxu0
        %v775 = vadd.f32 %v623, %v774
        %v776 = vpop.f32.mrf.mxu0
        %v777 = vadd.f32 %v627, %v776
        %v778 = vpop.f32.mrf.mxu0
        %v779 = vadd.f32 %v623, %v778
        %v780 = vpop.f32.mrf.mxu0
        %v781 = vadd.f32 %v627, %v780
        %782 = vmatprep.mubr.bf16.mxu0 0
        %783 = vmatmul.mubr.bf16.gmra.mxu0 %v590
        %v784 = vpop.f32.mrf.mxu0
        %v785 = vadd.f32 %v623, %v784
        %v786 = vpop.f32.mrf.mxu0
        %v787 = vadd.f32 %v627, %v786
        %v788 = vpop.f32.mrf.mxu0
        %v789 = vadd.f32 %v623, %v788
        %v790 = vpop.f32.mrf.mxu0
        %v791 = vadd.f32 %v627, %v790
        %792 = vmatprep.mubr.bf16.mxu0 0
        %793 = vmatmul.mubr.bf16.gmra.mxu0 %v591
        %v794 = vpop.f32.mrf.mxu0
        %v795 = vadd.f32 %v623, %v794
        %v796 = vpop.f32.mrf.mxu0
        %v797 = vadd.f32 %v627, %v796
        %v798 = vpop.f32.mrf.mxu0
        %v799 = vadd.f32 %v623, %v798
        %v800 = vpop.f32.mrf.mxu0
        %v801 = vadd.f32 %v627, %v800
        %802 = vmatprep.mubr.bf16.mxu0 0
        %803 = vmatmul.mubr.bf16.gmra.mxu0 %v592
        %v804 = vpop.f32.mrf.mxu0
        %v805 = vadd.f32 %v623, %v804
        %v806 = vpop.f32.mrf.mxu0
        %v807 = vadd.f32 %v627, %v806
        %v808 = vpop.f32.mrf.mxu0
        %v809 = vadd.f32 %v623, %v808
        %v810 = vpop.f32.mrf.mxu0
        %v811 = vadd.f32 %v627, %v810
        %812 = vmatprep.mubr.bf16.mxu0 0
        %813 = vmatmul.mubr.bf16.gmra.mxu0 %v593
        %v814 = vpop.f32.mrf.mxu0
        %v815 = vadd.f32 %v623, %v814
        %v816 = vpop.f32.mrf.mxu0
        %v817 = vadd.f32 %v627, %v816
        %v818 = vpop.f32.mrf.mxu0
        %v819 = vadd.f32 %v623, %v818
        %v820 = vpop.f32.mrf.mxu0
        %v821 = vadd.f32 %v627, %v820
        %822 = vmatprep.mubr.bf16.mxu0 0
        %823 = vmatmul.mubr.bf16.gmra.mxu0 %v594
        %v824 = vpop.f32.mrf.mxu0
        %v825 = vadd.f32 %v623, %v824
        %v826 = vpop.f32.mrf.mxu0
        %v827 = vadd.f32 %v627, %v826
        %v828 = vpop.f32.mrf.mxu0
        %v829 = vadd.f32 %v623, %v828
        %v830 = vpop.f32.mrf.mxu0
        %v831 = vadd.f32 %v627, %v830
        %832 = vmatprep.mubr.bf16.mxu0 0
        %833 = vmatmul.mubr.bf16.gmra.mxu0 %v595
        %v834 = vpop.f32.mrf.mxu0
        %v835 = vadd.f32 %v623, %v834
        %v836 = vpop.f32.mrf.mxu0
        %v837 = vadd.f32 %v627, %v836
        %v838 = vpop.f32.mrf.mxu0
        %v839 = vadd.f32 %v623, %v838
        %v840 = vpop.f32.mrf.mxu0
        %v841 = vadd.f32 %v627, %v840
        %842 = vmatprep.mubr.bf16.mxu0 0
        %843 = vmatmul.mubr.bf16.gmra.mxu0 %v596
        %v844 = vpop.f32.mrf.mxu0
        %v845 = vadd.f32 %v623, %v844
        %v846 = vpop.f32.mrf.mxu0
        %v847 = vadd.f32 %v627, %v846
        %v848 = vpop.f32.mrf.mxu0
        %v849 = vadd.f32 %v623, %v848
        %v850 = vpop.f32.mrf.mxu0
        %v851 = vadd.f32 %v627, %v850
        %852 = vmatprep.mubr.bf16.mxu0 0
        %853 = vmatmul.mubr.bf16.gmra.mxu0 %v597
        %v854 = vpop.f32.mrf.mxu0
        %v855 = vadd.f32 %v623, %v854
        %v856 = vpop.f32.mrf.mxu0
        %v857 = vadd.f32 %v627, %v856
        %v858 = vpop.f32.mrf.mxu0
        %v859 = vadd.f32 %v623, %v858
        %v860 = vpop.f32.mrf.mxu0
        %v861 = vadd.f32 %v627, %v860
        %862 = vmatprep.mubr.bf16.mxu0 0
        %863 = vmatmul.mubr.bf16.gmra.mxu0 %v598
        %v864 = vpop.f32.mrf.mxu0
        %v865 = vadd.f32 %v623, %v864
        %v866 = vpop.f32.mrf.mxu0
        %v867 = vadd.f32 %v627, %v866
        %v868 = vpop.f32.mrf.mxu0
        %v869 = vadd.f32 %v623, %v868
        %v870 = vpop.f32.mrf.mxu0
        %v871 = vadd.f32 %v627, %v870
        %872 = vmatprep.mubr.bf16.mxu0 0
        %873 = vmatmul.mubr.bf16.gmra.mxu0 %v599
        %v874 = vpop.f32.mrf.mxu0
        %v875 = vadd.f32 %v623, %v874
        %v876 = vpop.f32.mrf.mxu0
        %v877 = vadd.f32 %v627, %v876
        %v878 = vpop.f32.mrf.mxu0
        %v879 = vadd.f32 %v623, %v878
        %v880 = vpop.f32.mrf.mxu0
        %v881 = vadd.f32 %v627, %v880
        %882 = vmatprep.mubr.bf16.mxu0 0
        %883 = vmatmul.mubr.bf16.gmra.mxu0 %v600
        %v884 = vpop.f32.mrf.mxu0
        %v885 = vadd.f32 %v623, %v884
        %v886 = vpop.f32.mrf.mxu0
        %v887 = vadd.f32 %v627, %v886
        %v888 = vpop.f32.mrf.mxu0
        %v889 = vadd.f32 %v623, %v888
        %v890 = vpop.f32.mrf.mxu0
        %v891 = vadd.f32 %v627, %v890
        %892 = vmatprep.mubr.bf16.mxu0 0
        %893 = vmatmul.mubr.bf16.gmra.mxu0 %v601
        %v894 = vpop.f32.mrf.mxu0
        %v895 = vadd.f32 %v623, %v894
        %v896 = vpop.f32.mrf.mxu0
        %v897 = vadd.f32 %v627, %v896
        %v898 = vpop.f32.mrf.mxu0
        %v899 = vadd.f32 %v623, %v898
        %v900 = vpop.f32.mrf.mxu0
        %v901 = vadd.f32 %v627, %v900
        %902 = vdwg.mxu0
        %v903 = vmax.f32 %v745, 0.0
        %v904 = vmax.f32 %v747, 0.0
        %v905 = vmax.f32 %v749, 0.0
        %v906 = vmax.f32 %v751, 0.0
        %v907 = vmax.f32 %v755, 0.0
        %v908 = vmax.f32 %v757, 0.0
        %v909 = vmax.f32 %v759, 0.0
        %v910 = vmax.f32 %v761, 0.0
        %v911 = vmax.f32 %v765, 0.0
        %v912 = vmax.f32 %v767, 0.0
        %v913 = vmax.f32 %v769, 0.0
        %v914 = vmax.f32 %v771, 0.0
        %v915 = vmax.f32 %v775, 0.0
        %v916 = vmax.f32 %v777, 0.0
        %v917 = vmax.f32 %v779, 0.0
        %v918 = vmax.f32 %v781, 0.0
        %v919 = vmax.f32 %v785, 0.0
        %v920 = vmax.f32 %v787, 0.0
        %v921 = vmax.f32 %v789, 0.0
        %v922 = vmax.f32 %v791, 0.0
        %v923 = vmax.f32 %v795, 0.0
        %v924 = vmax.f32 %v797, 0.0
        %v925 = vmax.f32 %v799, 0.0
        %v926 = vmax.f32 %v801, 0.0
        %v927 = vmax.f32 %v805, 0.0
        %v928 = vmax.f32 %v807, 0.0
        %v929 = vmax.f32 %v809, 0.0
        %v930 = vmax.f32 %v811, 0.0
        %v931 = vmax.f32 %v815, 0.0
        %v932 = vmax.f32 %v817, 0.0
        %v933 = vmax.f32 %v819, 0.0
        %v934 = vmax.f32 %v821, 0.0
        %v935 = vmax.f32 %v825, 0.0
        %v936 = vmax.f32 %v827, 0.0
        %v937 = vmax.f32 %v829, 0.0
        %v938 = vmax.f32 %v831, 0.0
        %v939 = vmax.f32 %v835, 0.0
        %v940 = vmax.f32 %v837, 0.0
        %v941 = vmax.f32 %v839, 0.0
        %v942 = vmax.f32 %v841, 0.0
        %v943 = vmax.f32 %v845, 0.0
        %v944 = vmax.f32 %v847, 0.0
        %v945 = vmax.f32 %v849, 0.0
        %v946 = vmax.f32 %v851, 0.0
        %v947 = vmax.f32 %v855, 0.0
        %v948 = vmax.f32 %v857, 0.0
        %v949 = vmax.f32 %v859, 0.0
        %v950 = vmax.f32 %v861, 0.0
        %v951 = vmax.f32 %v865, 0.0
        %v952 = vmax.f32 %v867, 0.0
        %v953 = vmax.f32 %v869, 0.0
        %v954 = vmax.f32 %v871, 0.0
        %v955 = vmax.f32 %v875, 0.0
        %v956 = vmax.f32 %v877, 0.0
        %v957 = vmax.f32 %v879, 0.0
        %v958 = vmax.f32 %v881, 0.0
        %v959 = vmax.f32 %v885, 0.0
        %v960 = vmax.f32 %v887, 0.0
        %v961 = vmax.f32 %v889, 0.0
        %v962 = vmax.f32 %v891, 0.0
        %v963 = vmax.f32 %v895, 0.0
        %v964 = vmax.f32 %v897, 0.0
        %v965 = vmax.f32 %v899, 0.0
        %v966 = vmax.f32 %v901, 0.0
        %v967 = vpack.c.bf16 %v905, %v903
        %v968 = vpack.c.bf16 %v906, %v904
        %v969 = vpack.c.bf16 %v909, %v907
        %v970 = vpack.c.bf16 %v910, %v908
        %v971 = vpack.c.bf16 %v913, %v911
        %v972 = vpack.c.bf16 %v914, %v912
        %v973 = vpack.c.bf16 %v917, %v915
        %v974 = vpack.c.bf16 %v918, %v916
        %v975 = vpack.c.bf16 %v921, %v919
        %v976 = vpack.c.bf16 %v922, %v920
        %v977 = vpack.c.bf16 %v925, %v923
        %v978 = vpack.c.bf16 %v926, %v924
        %v979 = vpack.c.bf16 %v929, %v927
        %v980 = vpack.c.bf16 %v930, %v928
        %v981 = vpack.c.bf16 %v933, %v931
        %v982 = vpack.c.bf16 %v934, %v932
        %v983 = vpack.c.bf16 %v937, %v935
        %v984 = vpack.c.bf16 %v938, %v936
        %v985 = vpack.c.bf16 %v941, %v939
        %v986 = vpack.c.bf16 %v942, %v940
        %v987 = vpack.c.bf16 %v945, %v943
        %v988 = vpack.c.bf16 %v946, %v944
        %v989 = vpack.c.bf16 %v949, %v947
        %v990 = vpack.c.bf16 %v950, %v948
        %v991 = vpack.c.bf16 %v953, %v951
        %v992 = vpack.c.bf16 %v954, %v952
        %v993 = vpack.c.bf16 %v957, %v955
        %v994 = vpack.c.bf16 %v958, %v956
        %v995 = vpack.c.bf16 %v961, %v959
        %v996 = vpack.c.bf16 %v962, %v960
        %v997 = vpack.c.bf16 %v965, %v963
        %v998 = vpack.c.bf16 %v966, %v964
        %v999 = vld [vmem:[%s5] sm:$0xf]
        %v1000 = vld [vmem:[%s5 + $0x4] sm:$0xf]
        %v1001 = vld [vmem:[%s5 + $0x8] sm:$0xf]
        %v1002 = vld [vmem:[%s5 + $0xc] sm:$0xf]
        %v1003 = vld [vmem:[%s5 + $0x10] sm:$0xf]
        %v1004 = vld [vmem:[%s5 + $0x14] sm:$0xf]
        %v1005 = vld [vmem:[%s5 + $0x18] sm:$0xf]
        %v1006 = vld [vmem:[%s5 + $0x1c] sm:$0xf]
        %v1007 = vld [vmem:[%s5 + $0x20] sm:$0xf]
        %v1008 = vld [vmem:[%s5 + $0x24] sm:$0xf]
        %v1009 = vld [vmem:[%s5 + $0x28] sm:$0xf]
        %v1010 = vld [vmem:[%s5 + $0x2c] sm:$0xf]
        %v1011 = vld [vmem:[%s5 + $0x30] sm:$0xf]
        %v1012 = vld [vmem:[%s5 + $0x34] sm:$0xf]
        %v1013 = vld [vmem:[%s5 + $0x38] sm:$0xf]
        %v1014 = vld [vmem:[%s5 + $0x3c] sm:$0xf]
        %v1015 = vld [vmem:[%s5 + $0x40] sm:$0xf]
        %v1016 = vld [vmem:[%s5 + $0x44] sm:$0xf]
        %v1017 = vld [vmem:[%s5 + $0x48] sm:$0xf]
        %v1018 = vld [vmem:[%s5 + $0x4c] sm:$0xf]
        %v1019 = vld [vmem:[%s5 + $0x50] sm:$0xf]
        %v1020 = vld [vmem:[%s5 + $0x54] sm:$0xf]
        %v1021 = vld [vmem:[%s5 + $0x58] sm:$0xf]
        %v1022 = vld [vmem:[%s5 + $0x5c] sm:$0xf]
        %v1023 = vld [vmem:[%s5 + $0x60] sm:$0xf]
        %v1024 = vld [vmem:[%s5 + $0x64] sm:$0xf]
        %v1025 = vld [vmem:[%s5 + $0x68] sm:$0xf]
        %v1026 = vld [vmem:[%s5 + $0x6c] sm:$0xf]
        %v1027 = vld [vmem:[%s5 + $0x70] sm:$0xf]
        %v1028 = vld [vmem:[%s5 + $0x74] sm:$0xf]
        %v1029 = vld [vmem:[%s5 + $0x78] sm:$0xf]
        %v1030 = vld [vmem:[%s5 + $0x7c] sm:$0xf]
        %v1031 = vld [vmem:[%s6] sm:$0x1]
        %v1033 = vlaneseq
        %v1034 = vshrl.u32 %v1033, 7
        %v1035 = vsub.s32 0, %v1034
        %v1036 = vrot.slane %v1031, %v1035
        %v1070 = vunpack.c.l.b16 %v999
        %v1071 = vunpack.c.l.b16 %v1000
        %v1072 = vunpack.c.l.b16 %v1001
        %v1073 = vunpack.c.l.b16 %v1002
        %v1074 = vunpack.c.l.b16 %v1003
        %v1075 = vunpack.c.l.b16 %v1004
        %v1076 = vunpack.c.l.b16 %v1005
        %v1077 = vunpack.c.l.b16 %v1006
        %v1078 = vunpack.c.l.b16 %v1007
        %v1079 = vunpack.c.l.b16 %v1008
        %v1080 = vunpack.c.l.b16 %v1009
        %v1081 = vunpack.c.l.b16 %v1010
        %v1082 = vunpack.c.l.b16 %v1011
        %v1083 = vunpack.c.l.b16 %v1012
        %v1084 = vunpack.c.l.b16 %v1013
        %v1085 = vunpack.c.l.b16 %v1014
        %v1086 = vunpack.c.l.b16 %v1015
        %v1087 = vunpack.c.l.b16 %v1016
        %v1088 = vunpack.c.l.b16 %v1017
        %v1089 = vunpack.c.l.b16 %v1018
        %v1090 = vunpack.c.l.b16 %v1019
        %v1091 = vunpack.c.l.b16 %v1020
        %v1092 = vunpack.c.l.b16 %v1021
        %v1093 = vunpack.c.l.b16 %v1022
        %v1094 = vunpack.c.l.b16 %v1023
        %v1095 = vunpack.c.l.b16 %v1024
        %v1096 = vunpack.c.l.b16 %v1025
        %v1097 = vunpack.c.l.b16 %v1026
        %v1098 = vunpack.c.l.b16 %v1027
        %v1099 = vunpack.c.l.b16 %v1028
        %v1100 = vunpack.c.l.b16 %v1029
        %v1101 = vunpack.c.l.b16 %v1030
        %v1102 = vpack.c.b16 %v1071, %v1070
        %v1103 = vpack.c.b16 %v1073, %v1072
        %v1104 = vpack.c.b16 %v1075, %v1074
        %v1105 = vpack.c.b16 %v1077, %v1076
        %v1106 = vpack.c.b16 %v1079, %v1078
        %v1107 = vpack.c.b16 %v1081, %v1080
        %v1108 = vpack.c.b16 %v1083, %v1082
        %v1109 = vpack.c.b16 %v1085, %v1084
        %v1110 = vpack.c.b16 %v1087, %v1086
        %v1111 = vpack.c.b16 %v1089, %v1088
        %v1112 = vpack.c.b16 %v1091, %v1090
        %v1113 = vpack.c.b16 %v1093, %v1092
        %v1114 = vpack.c.b16 %v1095, %v1094
        %v1115 = vpack.c.b16 %v1097, %v1096
        %v1116 = vpack.c.b16 %v1099, %v1098
        %v1117 = vpack.c.b16 %v1101, %v1100
        %1134 = vmatprep.subr.bf16.mxu0 0
        %1135 = vmatpush1.bf16.msra.mxu0 %v1109
        %1136 = vmatprep.subr.bf16.mxu0 0
        %1137 = vmatpush1.bf16.msra.mxu0 %v1108
        %1138 = vmatprep.subr.bf16.mxu0 0
        %1139 = vmatpush1.bf16.msra.mxu0 %v1107
        %1140 = vmatprep.subr.bf16.mxu0 0
        %1141 = vmatpush1.bf16.msra.mxu0 %v1106
        %1142 = vmatprep.subr.bf16.mxu0 0
        %1143 = vmatpush1.bf16.msra.mxu0 %v1105
        %1144 = vmatprep.subr.bf16.mxu0 0
        %1145 = vmatpush1.bf16.msra.mxu0 %v1104
        %1146 = vmatprep.subr.bf16.mxu0 0
        %1147 = vmatpush1.bf16.msra.mxu0 %v1103
        %1148 = vmatprep.subr.bf16.mxu0 0
        %1149 = vmatpush1.bf16.msra.mxu0 %v1102
        %1150 = vmatprep.subr.bf16.mxu0 0
        %1151 = vmatpush2.bf16.msra.mxu0 %v1117
        %1152 = vmatprep.subr.bf16.mxu0 0
        %1153 = vmatpush2.bf16.msra.mxu0 %v1116
        %1154 = vmatprep.subr.bf16.mxu0 0
        %1155 = vmatpush2.bf16.msra.mxu0 %v1115
        %1156 = vmatprep.subr.bf16.mxu0 0
        %1157 = vmatpush2.bf16.msra.mxu0 %v1114
        %1158 = vmatprep.subr.bf16.mxu0 0
        %1159 = vmatpush2.bf16.msra.mxu0 %v1113
        %1160 = vmatprep.subr.bf16.mxu0 0
        %1161 = vmatpush2.bf16.msra.mxu0 %v1112
        %1162 = vmatprep.subr.bf16.mxu0 0
        %1163 = vmatpush2.bf16.msra.mxu0 %v1111
        %1164 = vmatprep.subr.bf16.mxu0 0
        %1165 = vmatpush2.bf16.msra.mxu0 %v1110
        %1166 = vmatprep.mubr.bf16.mxu0 %v968
        %1167 = vmatmul.mubr.bf16.gmra.mxu0 %v967
        %v1168 = vpop.f32.mrf.mxu0
        %v1169 = vadd.f32 %v1036, %v1168
        %v1170 = vpop.f32.mrf.mxu0
        %v1171 = vpop.f32.mrf.mxu0
        %v1172 = vadd.f32 %v1036, %v1171
        %v1173 = vpop.f32.mrf.mxu0
        %1174 = vmatprep.mubr.bf16.mxu0 %v970
        %1175 = vmatmul.mubr.bf16.gmra.mxu0 %v969
        %v1176 = vpop.f32.mrf.mxu0
        %v1177 = vadd.f32 %v1036, %v1176
        %v1178 = vpop.f32.mrf.mxu0
        %v1179 = vpop.f32.mrf.mxu0
        %v1180 = vadd.f32 %v1036, %v1179
        %v1181 = vpop.f32.mrf.mxu0
        %1182 = vmatprep.mubr.bf16.mxu0 %v972
        %1183 = vmatmul.mubr.bf16.gmra.mxu0 %v971
        %v1184 = vpop.f32.mrf.mxu0
        %v1185 = vadd.f32 %v1036, %v1184
        %v1186 = vpop.f32.mrf.mxu0
        %v1187 = vpop.f32.mrf.mxu0
        %v1188 = vadd.f32 %v1036, %v1187
        %v1189 = vpop.f32.mrf.mxu0
        %1190 = vmatprep.mubr.bf16.mxu0 %v974
        %1191 = vmatmul.mubr.bf16.gmra.mxu0 %v973
        %v1192 = vpop.f32.mrf.mxu0
        %v1193 = vadd.f32 %v1036, %v1192
        %v1194 = vpop.f32.mrf.mxu0
        %v1195 = vpop.f32.mrf.mxu0
        %v1196 = vadd.f32 %v1036, %v1195
        %v1197 = vpop.f32.mrf.mxu0
        %1198 = vmatprep.mubr.bf16.mxu0 %v976
        %1199 = vmatmul.mubr.bf16.gmra.mxu0 %v975
        %v1200 = vpop.f32.mrf.mxu0
        %v1201 = vadd.f32 %v1036, %v1200
        %v1202 = vpop.f32.mrf.mxu0
        %v1203 = vpop.f32.mrf.mxu0
        %v1204 = vadd.f32 %v1036, %v1203
        %v1205 = vpop.f32.mrf.mxu0
        %1206 = vmatprep.mubr.bf16.mxu0 %v978
        %1207 = vmatmul.mubr.bf16.gmra.mxu0 %v977
        %v1208 = vpop.f32.mrf.mxu0
        %v1209 = vadd.f32 %v1036, %v1208
        %v1210 = vpop.f32.mrf.mxu0
        %v1211 = vpop.f32.mrf.mxu0
        %v1212 = vadd.f32 %v1036, %v1211
        %v1213 = vpop.f32.mrf.mxu0
        %1214 = vmatprep.mubr.bf16.mxu0 %v980
        %1215 = vmatmul.mubr.bf16.gmra.mxu0 %v979
        %v1216 = vpop.f32.mrf.mxu0
        %v1217 = vadd.f32 %v1036, %v1216
        %v1218 = vpop.f32.mrf.mxu0
        %v1219 = vpop.f32.mrf.mxu0
        %v1220 = vadd.f32 %v1036, %v1219
        %v1221 = vpop.f32.mrf.mxu0
        %1222 = vmatprep.mubr.bf16.mxu0 %v982
        %1223 = vmatmul.mubr.bf16.gmra.mxu0 %v981
        %v1224 = vpop.f32.mrf.mxu0
        %v1225 = vadd.f32 %v1036, %v1224
        %v1226 = vpop.f32.mrf.mxu0
        %v1227 = vpop.f32.mrf.mxu0
        %v1228 = vadd.f32 %v1036, %v1227
        %v1229 = vpop.f32.mrf.mxu0
        %1230 = vmatprep.mubr.bf16.mxu0 %v984
        %1231 = vmatmul.mubr.bf16.gmra.mxu0 %v983
        %v1232 = vpop.f32.mrf.mxu0
        %v1233 = vadd.f32 %v1036, %v1232
        %v1234 = vpop.f32.mrf.mxu0
        %v1235 = vpop.f32.mrf.mxu0
        %v1236 = vadd.f32 %v1036, %v1235
        %v1237 = vpop.f32.mrf.mxu0
        %1238 = vmatprep.mubr.bf16.mxu0 %v986
        %1239 = vmatmul.mubr.bf16.gmra.mxu0 %v985
        %v1240 = vpop.f32.mrf.mxu0
        %v1241 = vadd.f32 %v1036, %v1240
        %v1242 = vpop.f32.mrf.mxu0
        %v1243 = vpop.f32.mrf.mxu0
        %v1244 = vadd.f32 %v1036, %v1243
        %v1245 = vpop.f32.mrf.mxu0
        %1246 = vmatprep.mubr.bf16.mxu0 %v988
        %1247 = vmatmul.mubr.bf16.gmra.mxu0 %v987
        %v1248 = vpop.f32.mrf.mxu0
        %v1249 = vadd.f32 %v1036, %v1248
        %v1250 = vpop.f32.mrf.mxu0
        %v1251 = vpop.f32.mrf.mxu0
        %v1252 = vadd.f32 %v1036, %v1251
        %v1253 = vpop.f32.mrf.mxu0
        %1254 = vmatprep.mubr.bf16.mxu0 %v990
        %1255 = vmatmul.mubr.bf16.gmra.mxu0 %v989
        %v1256 = vpop.f32.mrf.mxu0
        %v1257 = vadd.f32 %v1036, %v1256
        %v1258 = vpop.f32.mrf.mxu0
        %v1259 = vpop.f32.mrf.mxu0
        %v1260 = vadd.f32 %v1036, %v1259
        %v1261 = vpop.f32.mrf.mxu0
        %1262 = vmatprep.mubr.bf16.mxu0 %v992
        %1263 = vmatmul.mubr.bf16.gmra.mxu0 %v991
        %v1264 = vpop.f32.mrf.mxu0
        %v1265 = vadd.f32 %v1036, %v1264
        %v1266 = vpop.f32.mrf.mxu0
        %v1267 = vpop.f32.mrf.mxu0
        %v1268 = vadd.f32 %v1036, %v1267
        %v1269 = vpop.f32.mrf.mxu0
        %1270 = vmatprep.mubr.bf16.mxu0 %v994
        %1271 = vmatmul.mubr.bf16.gmra.mxu0 %v993
        %v1272 = vpop.f32.mrf.mxu0
        %v1273 = vadd.f32 %v1036, %v1272
        %v1274 = vpop.f32.mrf.mxu0
        %v1275 = vpop.f32.mrf.mxu0
        %v1276 = vadd.f32 %v1036, %v1275
        %v1277 = vpop.f32.mrf.mxu0
        %1278 = vmatprep.mubr.bf16.mxu0 %v996
        %1279 = vmatmul.mubr.bf16.gmra.mxu0 %v995
        %v1280 = vpop.f32.mrf.mxu0
        %v1281 = vadd.f32 %v1036, %v1280
        %v1282 = vpop.f32.mrf.mxu0
        %v1283 = vpop.f32.mrf.mxu0
        %v1284 = vadd.f32 %v1036, %v1283
        %v1285 = vpop.f32.mrf.mxu0
        %1286 = vmatprep.mubr.bf16.mxu0 %v998
        %1287 = vmatmul.mubr.bf16.gmra.mxu0 %v997
        %v1288 = vpop.f32.mrf.mxu0
        %v1289 = vadd.f32 %v1036, %v1288
        %v1290 = vpop.f32.mrf.mxu0
        %v1291 = vpop.f32.mrf.mxu0
        %v1292 = vadd.f32 %v1036, %v1291
        %v1293 = vpop.f32.mrf.mxu0
        %1294 = vdwg.mxu0
        %v1295 = vpack.c.bf16 %v1172, %v1169
        %v1296 = vpack.c.bf16 %v1180, %v1177
        %v1297 = vpack.c.bf16 %v1188, %v1185
        %v1298 = vpack.c.bf16 %v1196, %v1193
        %v1299 = vpack.c.bf16 %v1204, %v1201
        %v1300 = vpack.c.bf16 %v1212, %v1209
        %v1301 = vpack.c.bf16 %v1220, %v1217
        %v1302 = vpack.c.bf16 %v1228, %v1225
        %v1303 = vpack.c.bf16 %v1236, %v1233
        %v1304 = vpack.c.bf16 %v1244, %v1241
        %v1305 = vpack.c.bf16 %v1252, %v1249
        %v1306 = vpack.c.bf16 %v1260, %v1257
        %v1307 = vpack.c.bf16 %v1268, %v1265
        %v1308 = vpack.c.bf16 %v1276, %v1273
        %v1309 = vpack.c.bf16 %v1284, %v1281
        %v1310 = vpack.c.bf16 %v1292, %v1289
        %v1327 = vunpack.c.l.b16 %v1295
        %v1328 = vunpack.c.h.b16 %v1295
        %v1329 = vunpack.c.l.b16 %v1296
        %v1330 = vunpack.c.h.b16 %v1296
        %v1331 = vunpack.c.l.b16 %v1297
        %v1332 = vunpack.c.h.b16 %v1297
        %v1333 = vunpack.c.l.b16 %v1298
        %v1334 = vunpack.c.h.b16 %v1298
        %v1335 = vunpack.c.l.b16 %v1299
        %v1336 = vunpack.c.h.b16 %v1299
        %v1337 = vunpack.c.l.b16 %v1300
        %v1338 = vunpack.c.h.b16 %v1300
        %v1339 = vunpack.c.l.b16 %v1301
        %v1340 = vunpack.c.h.b16 %v1301
        %v1341 = vunpack.c.l.b16 %v1302
        %v1342 = vunpack.c.h.b16 %v1302
        %v1343 = vunpack.c.l.b16 %v1303
        %v1344 = vunpack.c.h.b16 %v1303
        %v1345 = vunpack.c.l.b16 %v1304
        %v1346 = vunpack.c.h.b16 %v1304
        %v1347 = vunpack.c.l.b16 %v1305
        %v1348 = vunpack.c.h.b16 %v1305
        %v1349 = vunpack.c.l.b16 %v1306
        %v1350 = vunpack.c.h.b16 %v1306
        %v1351 = vunpack.c.l.b16 %v1307
        %v1352 = vunpack.c.h.b16 %v1307
        %v1353 = vunpack.c.l.b16 %v1308
        %v1354 = vunpack.c.h.b16 %v1308
        %v1355 = vunpack.c.l.b16 %v1309
        %v1356 = vunpack.c.h.b16 %v1309
        %v1357 = vunpack.c.l.b16 %v1310
        %v1358 = vunpack.c.h.b16 %v1310
        %v1359 = vpack.c.b16 %v1327, %v1327
        %v1360 = vpack.c.b16 %v1328, %v1328
        %v1361 = vpack.c.b16 %v1329, %v1329
        %v1362 = vpack.c.b16 %v1330, %v1330
        %v1363 = vpack.c.b16 %v1331, %v1331
        %v1364 = vpack.c.b16 %v1332, %v1332
        %v1365 = vpack.c.b16 %v1333, %v1333
        %v1366 = vpack.c.b16 %v1334, %v1334
        %v1367 = vpack.c.b16 %v1335, %v1335
        %v1368 = vpack.c.b16 %v1336, %v1336
        %v1369 = vpack.c.b16 %v1337, %v1337
        %v1370 = vpack.c.b16 %v1338, %v1338
        %v1371 = vpack.c.b16 %v1339, %v1339
        %v1372 = vpack.c.b16 %v1340, %v1340
        %v1373 = vpack.c.b16 %v1341, %v1341
        %v1374 = vpack.c.b16 %v1342, %v1342
        %v1375 = vpack.c.b16 %v1343, %v1343
        %v1376 = vpack.c.b16 %v1344, %v1344
        %v1377 = vpack.c.b16 %v1345, %v1345
        %v1378 = vpack.c.b16 %v1346, %v1346
        %v1379 = vpack.c.b16 %v1347, %v1347
        %v1380 = vpack.c.b16 %v1348, %v1348
        %v1381 = vpack.c.b16 %v1349, %v1349
        %v1382 = vpack.c.b16 %v1350, %v1350
        %v1383 = vpack.c.b16 %v1351, %v1351
        %v1384 = vpack.c.b16 %v1352, %v1352
        %v1385 = vpack.c.b16 %v1353, %v1353
        %v1386 = vpack.c.b16 %v1354, %v1354
        %v1387 = vpack.c.b16 %v1355, %v1355
        %v1388 = vpack.c.b16 %v1356, %v1356
        %v1389 = vpack.c.b16 %v1357, %v1357
        %v1390 = vpack.c.b16 %v1358, %v1358
        %1423 = vst [vmem:[%s272] sm:$0xf] %v1359
        %1424 = vst [vmem:[%s272 + $0x4] sm:$0xf] %v1360
        %1425 = vst [vmem:[%s272 + $0x8] sm:$0xf] %v1361
        %1426 = vst [vmem:[%s272 + $0xc] sm:$0xf] %v1362
        %1427 = vst [vmem:[%s272 + $0x10] sm:$0xf] %v1363
        %1428 = vst [vmem:[%s272 + $0x14] sm:$0xf] %v1364
        %1429 = vst [vmem:[%s272 + $0x18] sm:$0xf] %v1365
        %1430 = vst [vmem:[%s272 + $0x1c] sm:$0xf] %v1366
        %1431 = vst [vmem:[%s272 + $0x20] sm:$0xf] %v1367
        %1432 = vst [vmem:[%s272 + $0x24] sm:$0xf] %v1368
        %1433 = vst [vmem:[%s272 + $0x28] sm:$0xf] %v1369
        %1434 = vst [vmem:[%s272 + $0x2c] sm:$0xf] %v1370
        %1435 = vst [vmem:[%s272 + $0x30] sm:$0xf] %v1371
        %1436 = vst [vmem:[%s272 + $0x34] sm:$0xf] %v1372
        %1437 = vst [vmem:[%s272 + $0x38] sm:$0xf] %v1373
        %1438 = vst [vmem:[%s272 + $0x3c] sm:$0xf] %v1374
        %1439 = vst [vmem:[%s272 + $0x40] sm:$0xf] %v1375
        %1440 = vst [vmem:[%s272 + $0x44] sm:$0xf] %v1376
        %1441 = vst [vmem:[%s272 + $0x48] sm:$0xf] %v1377
        %1442 = vst [vmem:[%s272 + $0x4c] sm:$0xf] %v1378
        %1443 = vst [vmem:[%s272 + $0x50] sm:$0xf] %v1379
        %1444 = vst [vmem:[%s272 + $0x54] sm:$0xf] %v1380
        %1445 = vst [vmem:[%s272 + $0x58] sm:$0xf] %v1381
        %1446 = vst [vmem:[%s272 + $0x5c] sm:$0xf] %v1382
        %1447 = vst [vmem:[%s272 + $0x60] sm:$0xf] %v1383
        %1448 = vst [vmem:[%s272 + $0x64] sm:$0xf] %v1384
        %1449 = vst [vmem:[%s272 + $0x68] sm:$0xf] %v1385
        %1450 = vst [vmem:[%s272 + $0x6c] sm:$0xf] %v1386
        %1451 = vst [vmem:[%s272 + $0x70] sm:$0xf] %v1387
        %1452 = vst [vmem:[%s272 + $0x74] sm:$0xf] %v1388
        %1453 = vst [vmem:[%s272 + $0x78] sm:$0xf] %v1389
        %1454 = vst [vmem:[%s272 + $0x7c] sm:$0xf] %v1390
        %s1455 = sand.u32 %s181, 1
        %s1456 = scalar_lea.sflag [#allocation3], %s1455
        %s1457 = sand.u32 %s181, 1
        %s1458 = smul.addr %s1457, 128
        %s1459 = scalar_lea.vmem [#allocation2], %s1458
        // Predicated region
        $region49: #{tpu_custom_call.1} parent=47 // pred_check
          %p1460 = pneg %p191
        $region50: #{tpu_custom_call.1} parent=47 // pred_check_branch
          %1462 = sbr.rel (%p1460) target = $region52
        $region51: #{tpu_custom_call.1} parent=47 // pred_region
          %s1463 = smul.u32 32, %s21
          %s1465 = ssub.s32 2048, 2048
          %1466 = vsyncadd %s1456, %s1465
          %s1467 = smul.addr %s1463, 64
          %s1468 = scalar_lea.hbm %s7, %s1467
          %s1469 = sshll.u32 %s1459, 4
          %s1470 = int_to_ptr.vmem [resolvable:$true] %s1469
          %1475 = dma.vmem_to_hbm [thread:$0]  %s1470, 2048, %s1468, %s1456, 64, 64, 4
        $region52: #{tpu_custom_call.1} parent=47 // pred_fallthru
          _
      $region48: #{tpu_custom_call.1} parent=5 // pred_fallthru
        _
      %p1476 = scmp.le.s32.totalorder 2, %s16
      // Predicated region
      $region53: #{tpu_custom_call.1} parent=5 // pred_check
        %p1477 = pneg %p1476
      $region54: #{tpu_custom_call.1} parent=5 // pred_check_branch
        %1479 = sbr.rel (%p1477) target = $region56
      $region55: #{tpu_custom_call.1} parent=5 // pred_region
        %s1480 = ssub.s32 %s16, 2
        // Predicated region
        $region57: #{tpu_custom_call.1} parent=55 // pred_check
          %p1481 = pneg %p197
        $region58: #{tpu_custom_call.1} parent=55 // pred_check_branch
          %1483 = sbr.rel (%p1481) target = $region60
        $region59: #{tpu_custom_call.1} parent=55 // pred_region
          %s1484 = sand.u32 %s182, 1
          %s1485 = scalar_lea.sflag [#allocation3], %s1484
          %s1486 = sand.u32 %s182, 1
          %s1487 = smul.addr %s1486, 128
          %s1488 = scalar_lea.vmem [#allocation2], %s1487
          %1489 = dma.done %s1485, 2048
        $region60: #{tpu_custom_call.1} parent=55 // pred_fallthru
          _
      $region56: #{tpu_custom_call.1} parent=5 // pred_fallthru
        _
    $region6: #{tpu_custom_call.1} parent=1 // loop_footer
      %s20 = sadd.s32 1, %s16
    $region7: #{tpu_custom_call.1} parent=1 // loop_footer_branch
      %15 = sbr.rel target = $region3
    $region8: #{tpu_custom_call.1} parent=1 // loop_exit
      _
    %1490 = vsyncpa [#allocation3], 1
    %s1491 = scalar_lea.sflag [#allocation3], 1
    %1492 = vsyncpa %s1491, 1

</llo_original>
